<compile_context>
chip_gen: v7x
topology: tpu7x:2x2x1
jax: 0.10.0
libtpu: 0.0.40
codegen_flags: <defaults>
</compile_context>

<pallas_src>
import jax
import jax.numpy as jnp
from jax.experimental import pallas as pl
from jax.experimental.pallas import tpu as pltpu

HIDDEN = 20
BN_EPS = 1e-5
MAX_TB = 16384          # batch-tile columns (lane dim) per grid step
SMALL_BATCH_FALLBACK = 512


def _cdiv(a, b):
    return (a + b - 1) // b


# -----------------------------------------------------------------------------
# Kernel: feature-major in, feature-major (lane-dense) out.
#   xT   : (H, tb)      input tile
#   w5T  : (2H, H)      fused, BN-folded hidden weight (feature-major)
#   c5   : (2H, 1)      fused hidden bias (column, broadcast over lanes)
#   wfT  : (2, 2H)      block-diagonal final weight (feature-major)
#   bf   : (2, 1)       final bias (column)
#   out  : (2, tb)      row 0 = x_m, row 1 = x_s
# -----------------------------------------------------------------------------
def _disc_kernel(xT_ref, w5T_ref, c5_ref, wfT_ref, bf_ref, o_ref):
    xT = xT_ref[...]
    hT = jnp.maximum(
        jnp.dot(w5T_ref[...], xT, preferred_element_type=jnp.float32) + c5_ref[...],
        0.0,
    )
    o_ref[...] = (
        jnp.dot(wfT_ref[...], hT, preferred_element_type=jnp.float32) + bf_ref[...]
    )


# -----------------------------------------------------------------------------
# One-time parameter preparation (hoisted out of the per-call path).
# -----------------------------------------------------------------------------
def prepare_params(params):
    """Fold BN running stats + biases into fused, feature-major weights."""
    H = HIDDEN

    def fold(w, b, bn):
        # PyTorch linear: z = x @ W^T + b, W is (out, in).
        # Feature-major:  zT = W @ xT + b[:,None];  bn(z) = z*scale + shift
        # => folded feature-major weight = scale[:,None]*W, bias = b*scale+shift.
        gamma, beta, mean, var = bn
        scale = gamma * jax.lax.rsqrt(var + BN_EPS)
        shift = beta - mean * scale
        return w * scale[:, None], b * scale + shift

    w5m, c5m = fold(params["fc5_m_w"], params["fc5_m_b"], params["bn5_m"])
    w5s, c5s = fold(params["fc5_s_w"], params["fc5_s_b"], params["bn5_s"])

    w5T = jnp.concatenate([w5m, w5s], axis=0)                    # (2H, H)
    c5_col = jnp.concatenate([c5m, c5s], axis=0)[:, None]        # (2H, 1)

    wfm = params["fc_final_m_w"]                                 # (1, H)
    wfs = params["fc_final_s_w"]                                 # (1, H)
    z = jnp.zeros((1, H), jnp.float32)
    wfT = jnp.concatenate(
        [jnp.concatenate([wfm, z], axis=1),
         jnp.concatenate([z, wfs], axis=1)],
        axis=0,
    )                                                            # (2, 2H)
    bf_col = jnp.concatenate(
        [params["fc_final_m_b"], params["fc_final_s_b"]]
    )[:, None]                                                   # (2, 1)

    return {"w5T": w5T, "c5_col": c5_col, "wfT": wfT, "bf_col": bf_col}


def _pick_tile(B):
    """Pick batch-tile (lane) size and grid length."""
    if B <= 256:
        # Single block covering the full (unpadded) batch extent.
        return B, 1
    # Prefer an even number of grid steps (v7x has 2 TensorCores); tb is a
    # multiple of 128 so the lane dim of every tile is aligned.
    n = max(2, _cdiv(B, MAX_TB))
    if n % 2:
        n += 1
    tb = _cdiv(_cdiv(B, n), 128) * 128
    return tb, _cdiv(B, tb)


# -----------------------------------------------------------------------------
# Forward wrapper.
# -----------------------------------------------------------------------------
def domain_d_disc_forward(x, domain, prepared, *, use_xla_small_batch=True):
    """Forward of DomainDDisc (eval mode). Returns (x_m, x_s), each (B, 1)."""
    del domain  # unsqueezed then unused in the reference forward
    B = x.shape[0]
    H = HIDDEN
    x = x.astype(jnp.float32)

    if use_xla_small_batch and B < SMALL_BATCH_FALLBACK:
        # Tiny MLP: XLA fuses this into one kernel with no launch overhead.
        h = jnp.maximum(x @ prepared["w5T"].T + prepared["c5_col"][:, 0], 0.0)
        out = h @ prepared["wfT"].T + prepared["bf_col"][:, 0]   # (B, 2)
        return out[:, 0:1], out[:, 1:2]

    # TODO(synk): ideally the upstream producer emits x feature-major (H, B);
    # this transpose is one extra fused HBM pass over x.
    xT = x.T                                                     # (H, B)
    tb, grid = _pick_tile(B)

    out = pl.pallas_call(
        _disc_kernel,
        out_shape=jax.ShapeDtypeStruct((2, B), jnp.float32),
        grid=(grid,),
        in_specs=[
            pl.BlockSpec((H, tb), lambda i: (0, i)),             # x tile (feature-major)
            pl.BlockSpec((2 * H, H), lambda i: (0, 0)),          # fused hidden weight
            pl.BlockSpec((2 * H, 1), lambda i: (0, 0)),          # fused hidden bias
            pl.BlockSpec((2, 2 * H), lambda i: (0, 0)),          # block-diag final weight
            pl.BlockSpec((2, 1), lambda i: (0, 0)),              # final bias
        ],
        out_specs=pl.BlockSpec((2, tb), lambda i: (0, i)),       # lane-dense output slab
        compiler_params=pltpu.CompilerParams(
            dimension_semantics=("parallel",),
        ),
    )(xT, prepared["w5T"], prepared["c5_col"], prepared["wfT"], prepared["bf_col"])

    return out[0][:, None], out[1][:, None]


# -----------------------------------------------------------------------------
# Synthetic parameters + pure-JAX reference (for the self-test).
# -----------------------------------------------------------------------------
def init_params(key):
    """Deterministic synthetic params matching the PyTorch module's shapes."""
    keys = jax.random.split(key, 16)
    p = {}

    def linear(kw, kb, fan_in, fan_out):
        bound = 1.0 / jnp.sqrt(jnp.float32(fan_in))
        w = jax.random.uniform(kw, (fan_out, fan_in), jnp.float32, -bound, bound)
        b = jax.random.uniform(kb, (fan_out,), jnp.float32, -bound, bound)
        return w, b

    def bn(kg, kb, km, kv, n):
        gamma = 1.0 + 0.1 * jax.random.normal(kg, (n,), jnp.float32)
        beta = 0.1 * jax.random.normal(kb, (n,), jnp.float32)
        mean = 0.1 * jax.random.normal(km, (n,), jnp.float32)
        var = jax.random.uniform(kv, (n,), jnp.float32, 0.5, 1.5)
        return gamma, beta, mean, var

    p["fc5_m_w"], p["fc5_m_b"] = linear(keys[0], keys[1], HIDDEN, HIDDEN)
    p["fc5_s_w"], p["fc5_s_b"] = linear(keys[2], keys[3], HIDDEN, HIDDEN)
    p["bn5_m"] = bn(keys[4], keys[5], keys[6], keys[7], HIDDEN)
    p["bn5_s"] = bn(keys[8], keys[9], keys[10], keys[11], HIDDEN)
    p["fc_final_m_w"], p["fc_final_m_b"] = linear(keys[12], keys[13], HIDDEN, 1)
    p["fc_final_s_w"], p["fc_final_s_b"] = linear(keys[14], keys[15], HIDDEN, 1)
    # Dead layers (fc3/bn3/fc4/bn4) are overwritten in the reference forward and
    # do not affect the output -> not instantiated here.
    return p


def reference_forward(x, params):
    """Pure-JAX reference (matches PyTorch eval forward)."""
    def bn_apply(z, bn):
        gamma, beta, mean, var = bn
        return gamma * (z - mean) / jnp.sqrt(var + BN_EPS) + beta

    hm = jax.nn.relu(bn_apply(x @ params["fc5_m_w"].T + params["fc5_m_b"],
                              params["bn5_m"]))
    hs = jax.nn.relu(bn_apply(x @ params["fc5_s_w"].T + params["fc5_s_b"],
                              params["bn5_s"]))
    om = hm @ params["fc_final_m_w"].T + params["fc_final_m_b"]
    os_ = hs @ params["fc_final_s_w"].T + params["fc_final_s_b"]
    return om, os_


if __name__ == "__main__":
    key = jax.random.PRNGKey(0)
    k_x, k_d, k_p, k_x2 = jax.random.split(key, 4)
    params = init_params(k_p)
    prepared = prepare_params(params)          # one-time fold, hoisted out of forward
    jax.block_until_ready(prepared)

    @jax.jit
    def fwd(x, domain, prep):
        return domain_d_disc_forward(x, domain, prep)

    @jax.jit
    def fwd_force_pallas(x, domain, prep):
        return domain_d_disc_forward(x, domain, prep, use_xla_small_batch=False)

    # Small shape (typical module use): B=8, hidden=20 — exercise the Pallas
    # kernel directly (fallback disabled) and the default fallback path.
    B = 8
    x = jax.random.normal(k_x, (B, HIDDEN), jnp.float32)
    domain = jax.random.normal(k_d, (B,), jnp.float32)      # ignored by forward
    ref_m, ref_s = reference_forward(x, params)

    out_m, out_s = fwd_force_pallas(x, domain, prepared)
    jax.block_until_ready((out_m, out_s))
    assert out_m.shape == (B, 1) and out_s.shape == (B, 1)
    assert jnp.allclose(out_m, ref_m, atol=1e-4, rtol=1e-4)
    assert jnp.allclose(out_s, ref_s, atol=1e-4, rtol=1e-4)

    out_m_f, out_s_f = fwd(x, domain, prepared)             # XLA small-batch path
    jax.block_until_ready((out_m_f, out_s_f))
    assert jnp.allclose(out_m_f, ref_m, atol=1e-4, rtol=1e-4)
    assert jnp.allclose(out_s_f, ref_s, atol=1e-4, rtol=1e-4)

    # Larger batch: multi-tile grid (even length for v7x) + ragged last block.
    B2 = 5000
    x2 = jax.random.normal(k_x2, (B2, HIDDEN), jnp.float32)
    domain2 = jnp.zeros((B2,), jnp.float32)
    out_m2, out_s2 = fwd(x2, domain2, prepared)
    jax.block_until_ready((out_m2, out_s2))
    ref_m2, ref_s2 = reference_forward(x2, params)
    assert out_m2.shape == (B2, 1) and out_s2.shape == (B2, 1)
    assert jnp.allclose(out_m2, ref_m2, atol=1e-4, rtol=1e-4)
    assert jnp.allclose(out_s2, ref_s2, atol=1e-4, rtol=1e-4)

    print("KERNEL_OK")
</pallas_src>

<mosaic_0001>
module attributes {stable_mosaic.version = 11 : i64} {
  func.func @_disc_kernel(%arg0: i32, %arg1: memref<20x8xf32, #tpu.memory_space<vmem>>, %arg2: memref<40x20xf32, #tpu.memory_space<vmem>>, %arg3: memref<40x1xf32, #tpu.memory_space<vmem>>, %arg4: memref<2x40xf32, #tpu.memory_space<vmem>>, %arg5: memref<2x1xf32, #tpu.memory_space<vmem>>, %arg6: memref<2x8xf32, #tpu.memory_space<vmem>>) attributes {dimension_semantics = [#tpu.dimension_semantics<parallel>], iteration_bounds = array<i64: 1>, scalar_prefetch = 0 : i64, scratch_operands = 0 : i64, tpu.core_type = #tpu.core_type<tc>, window_params = [{transform_indices = @transform_0, window_bounds = array<i64: 20, 8>}, {pipeline_mode = #tpu.pipeline_mode<synchronous>, transform_indices = @transform_1, window_bounds = array<i64: 40, 20>}, {pipeline_mode = #tpu.pipeline_mode<synchronous>, transform_indices = @transform_2, window_bounds = array<i64: 40, 1>}, {pipeline_mode = #tpu.pipeline_mode<synchronous>, transform_indices = @transform_3, window_bounds = array<i64: 2, 40>}, {pipeline_mode = #tpu.pipeline_mode<synchronous>, transform_indices = @transform_4, window_bounds = array<i64: 2, 1>}, {transform_indices = @transform_5, window_bounds = array<i64: 2, 8>}]} {
    %c0 = arith.constant 0 : index
    %c0_0 = arith.constant 0 : index
    %0 = vector.load %arg1[%c0, %c0_0] : memref<20x8xf32, #tpu.memory_space<vmem>>, vector<20x8xf32>
    %c0_1 = arith.constant 0 : index
    %c0_2 = arith.constant 0 : index
    %1 = vector.load %arg2[%c0_1, %c0_2] : memref<40x20xf32, #tpu.memory_space<vmem>>, vector<40x20xf32>
    %cst = arith.constant dense<0.000000e+00> : vector<40x8xf32>
    %2 = tpu.matmul %1, %0, %cst {dimension_numbers = #tpu.dot_dimension_numbers<[1], [0], [0], [1], [0, 0, 1, 1], [], []>} : vector<40x20xf32>, vector<20x8xf32>, vector<40x8xf32> -> vector<40x8xf32>
    %c0_3 = arith.constant 0 : index
    %c0_4 = arith.constant 0 : index
    %3 = vector.load %arg3[%c0_3, %c0_4] : memref<40x1xf32, #tpu.memory_space<vmem>>, vector<40x1xf32>
    %4 = vector.broadcast %3 : vector<40x1xf32> to vector<40x8xf32>
    %5 = arith.addf %2, %4 : vector<40x8xf32>
    %cst_5 = arith.constant 0.000000e+00 : f32
    %6 = vector.broadcast %cst_5 : f32 to vector<40x8xf32>
    %7 = arith.maximumf %5, %6 : vector<40x8xf32>
    %c0_6 = arith.constant 0 : index
    %c0_7 = arith.constant 0 : index
    %8 = vector.load %arg4[%c0_6, %c0_7] : memref<2x40xf32, #tpu.memory_space<vmem>>, vector<2x40xf32>
    %cst_8 = arith.constant dense<0.000000e+00> : vector<2x8xf32>
    %9 = tpu.matmul %8, %7, %cst_8 {dimension_numbers = #tpu.dot_dimension_numbers<[1], [0], [0], [1], [0, 0, 1, 1], [], []>} : vector<2x40xf32>, vector<40x8xf32>, vector<2x8xf32> -> vector<2x8xf32>
    %c0_9 = arith.constant 0 : index
    %c0_10 = arith.constant 0 : index
    %10 = vector.load %arg5[%c0_9, %c0_10] : memref<2x1xf32, #tpu.memory_space<vmem>>, vector<2x1xf32>
    %11 = vector.broadcast %10 : vector<2x1xf32> to vector<2x8xf32>
    %12 = arith.addf %9, %11 : vector<2x8xf32>
    %c0_11 = arith.constant 0 : index
    %c0_12 = arith.constant 0 : index
    %13 = vector.load %arg6[%c0_11, %c0_12] : memref<2x8xf32, #tpu.memory_space<vmem>>, vector<2x8xf32>
    tpu.vector_store %arg6[%c0_11, %c0_12], %12 {strides = array<i32>} : memref<2x8xf32, #tpu.memory_space<vmem>>, vector<2x8xf32>,
    return
  }
  func.func @transform_0(%arg0: i32) -> (i32, i32) {
    %c0_i32 = arith.constant 0 : i32
    %c0_i32_0 = arith.constant 0 : i32
    return %c0_i32, %arg0 : i32, i32
  }
  func.func @transform_1(%arg0: i32) -> (i32, i32) {
    %c0_i32 = arith.constant 0 : i32
    %c0_i32_0 = arith.constant 0 : i32
    %c0_i32_1 = arith.constant 0 : i32
    return %c0_i32, %c0_i32_0 : i32, i32
  }
  func.func @transform_2(%arg0: i32) -> (i32, i32) {
    %c0_i32 = arith.constant 0 : i32
    %c0_i32_0 = arith.constant 0 : i32
    %c0_i32_1 = arith.constant 0 : i32
    return %c0_i32, %c0_i32_0 : i32, i32
  }
  func.func @transform_3(%arg0: i32) -> (i32, i32) {
    %c0_i32 = arith.constant 0 : i32
    %c0_i32_0 = arith.constant 0 : i32
    %c0_i32_1 = arith.constant 0 : i32
    return %c0_i32, %c0_i32_0 : i32, i32
  }
  func.func @transform_4(%arg0: i32) -> (i32, i32) {
    %c0_i32 = arith.constant 0 : i32
    %c0_i32_0 = arith.constant 0 : i32
    %c0_i32_1 = arith.constant 0 : i32
    return %c0_i32, %c0_i32_0 : i32, i32
  }
  func.func @transform_5(%arg0: i32) -> (i32, i32) {
    %c0_i32 = arith.constant 0 : i32
    %c0_i32_0 = arith.constant 0 : i32
    return %c0_i32, %arg0 : i32, i32
  }
}

</mosaic_0001>

<llo_original>
// kernel: fwd_force_pallas.1
$region0: #{fwd_force_pallas.1}
  #allocation0 [shape = 'u32[]', space=smem, size = 0x4, offset = 0x4, fixed_abs, tag = 'smem constant byte address 0x4 - core index']
  #allocation1 [shape = 'u32[144,128]{1,0:T(1,128)}', space=vmem, size = 0x12000, scoped, tag = 'internal scratch']
  %s0 = inlined_call_operand.vmem [shape: f32[20,8], index: 0, kind: input, shape index: {}]
  %s1 = inlined_call_operand.vmem [shape: f32[40,20], index: 1, kind: input, shape index: {}]
  %s2 = inlined_call_operand.vmem [shape: f32[40,1], index: 2, kind: input, shape index: {}]
  %s3 = inlined_call_operand.vmem [shape: f32[2,40], index: 3, kind: input, shape index: {}]
  %s4 = inlined_call_operand.vmem [shape: f32[2,1], index: 4, kind: input, shape index: {}]
  %s5 = inlined_call_operand.vmem [shape: f32[2,8], index: 5, kind: output, shape index: {}]
  %s6 = sld [smem:[#allocation0]]
  $region30: #{fwd_force_pallas.1} parent=0
    _
  %s8 = ssub.s32 1, %s6
  %s9 = scalar_select 0, %s8, %s6
  // Predicated region
  $region2: #{fwd_force_pallas.1} parent=0 // pred_check
    _
  $region3: #{fwd_force_pallas.1} parent=0 // pred_check_branch
    %11 = sbr.rel (0) target = $region5
  $region4: #{fwd_force_pallas.1} parent=0 // pred_region
    _
  $region5: #{fwd_force_pallas.1} parent=0 // pred_fallthru
    _
  // Predicated region
  $region6: #{fwd_force_pallas.1} parent=0 // pred_check
    _
  $region7: #{fwd_force_pallas.1} parent=0 // pred_check_branch
    %13 = sbr.rel (0) target = $region9
  $region8: #{fwd_force_pallas.1} parent=0 // pred_region
    _
  $region9: #{fwd_force_pallas.1} parent=0 // pred_fallthru
    _
  // Predicated region
  $region10: #{fwd_force_pallas.1} parent=0 // pred_check
    _
  $region11: #{fwd_force_pallas.1} parent=0 // pred_check_branch
    %15 = sbr.rel (0) target = $region13
  $region12: #{fwd_force_pallas.1} parent=0 // pred_region
    _
  $region13: #{fwd_force_pallas.1} parent=0 // pred_fallthru
    _
  // Predicated region
  $region14: #{fwd_force_pallas.1} parent=0 // pred_check
    _
  $region15: #{fwd_force_pallas.1} parent=0 // pred_check_branch
    %17 = sbr.rel (0) target = $region17
  $region16: #{fwd_force_pallas.1} parent=0 // pred_region
    _
  $region17: #{fwd_force_pallas.1} parent=0 // pred_fallthru
    _
  // Predicated region
  $region18: #{fwd_force_pallas.1} parent=0 // pred_check
    _
  $region19: #{fwd_force_pallas.1} parent=0 // pred_check_branch
    %19 = sbr.rel (0) target = $region21
  $region20: #{fwd_force_pallas.1} parent=0 // pred_region
    _
  $region21: #{fwd_force_pallas.1} parent=0 // pred_fallthru
    _
  %v20 = vld [vmem:[%s0] sm:$0xff]
  %v21 = vld [vmem:[%s0 + $0x8] sm:$0xff]
  %v22 = vld [vmem:[%s0 + $0x10] sm:$0xf]
  %v23 = vld [vmem:[%s1] sm:$0xff]
  %v24 = vld [vmem:[%s1 + $0x8] sm:$0xff]
  %v25 = vld [vmem:[%s1 + $0x10] sm:$0xff]
  %v26 = vld [vmem:[%s1 + $0x18] sm:$0xff]
  %v27 = vld [vmem:[%s1 + $0x20] sm:$0xff]
  %v28 = vld [vmem:[%s2] sm:$0xff]
  %v29 = vld [vmem:[%s2 + $0x8] sm:$0xff]
  %v30 = vld [vmem:[%s2 + $0x10] sm:$0xff]
  %v31 = vld [vmem:[%s2 + $0x18] sm:$0xff]
  %v32 = vld [vmem:[%s2 + $0x20] sm:$0xff]
  %34 = vset.pattern.permute.xlu0 0
  %35 = vperm.xlu0 %34, %v28
  %v36 = vpop.permute.xlu0 %35
  %39 = vset.pattern.permute.xlu0 0
  %40 = vperm.xlu0 %39, %v29
  %v41 = vpop.permute.xlu0 %40
  %44 = vset.pattern.permute.xlu0 0
  %45 = vperm.xlu0 %44, %v30
  %v46 = vpop.permute.xlu0 %45
  %49 = vset.pattern.permute.xlu0 0
  %50 = vperm.xlu0 %49, %v31
  %v51 = vpop.permute.xlu0 %50
  %54 = vset.pattern.permute.xlu0 0
  %55 = vperm.xlu0 %54, %v32
  %v56 = vpop.permute.xlu0 %55
  %vm58 = vcmask 162816
  %v60 = vsel %vm58, %v23, 0
  %v63 = vsel %vm58, %v24, 0
  %v66 = vsel %vm58, %v25, 0
  %v69 = vsel %vm58, %v26, 0
  %v72 = vsel %vm58, %v27, 0
  %vm74 = vcmask 1043456
  %v76 = vsel %vm74, %v22, 0
  %78 = vmatprep.subr.mxu0 0.0
  %79 = vmatpush1.msra.mxu0 %v20
  %80 = vmatprep.subr.mxu0 0.0
  %81 = vmatpush1.msra.mxu0 %v21
  %82 = vmatprep.subr.mxu0 0.0
  %83 = vmatpush1.msra.mxu0 %v76
  %84 = vmatprep.subr.mxu0 0.0
  %85 = vmatpush1.msra.mxu0 0.0
  %86 = vmatprep.subr.mxu0 0.0
  %87 = vmatpush1.msra.mxu0 0.0
  %88 = vmatprep.subr.mxu0 0.0
  %89 = vmatpush1.msra.mxu0 0.0
  %90 = vmatprep.subr.mxu0 0.0
  %91 = vmatpush1.msra.mxu0 0.0
  %92 = vmatprep.subr.mxu0 0.0
  %93 = vmatpush1.msra.mxu0 0.0
  %94 = vmatprep.subr.mxu0 0.0
  %95 = vmatpush1.msra.mxu0 0.0
  %96 = vmatprep.subr.mxu0 0.0
  %97 = vmatpush1.msra.mxu0 0.0
  %98 = vmatprep.subr.mxu0 0.0
  %99 = vmatpush1.msra.mxu0 0.0
  %100 = vmatprep.subr.mxu0 0.0
  %101 = vmatpush1.msra.mxu0 0.0
  %102 = vmatprep.subr.mxu0 0.0
  %103 = vmatpush1.msra.mxu0 0.0
  %104 = vmatprep.subr.mxu0 0.0
  %105 = vmatpush1.msra.mxu0 0.0
  %106 = vmatprep.subr.mxu0 0.0
  %107 = vmatpush1.msra.mxu0 0.0
  %108 = vmatprep.subr.mxu0 0.0
  %109 = vmatpush1.msra.mxu0 0.0
  %110 = vmatprep.subr.mxu0 0.0
  %111 = vmatpush1.msra.mxu0 0.0
  %112 = vmatprep.subr.mxu0 0.0
  %113 = vmatpush1.msra.mxu0 0.0
  %114 = vmatprep.subr.mxu0 0.0
  %115 = vmatpush1.msra.mxu0 0.0
  %116 = vmatprep.subr.mxu0 0.0
  %117 = vmatpush1.msra.mxu0 0.0
  %118 = vmatprep.subr.mxu0 0.0
  %119 = vmatpush1.msra.mxu0 0.0
  %120 = vmatprep.subr.mxu0 0.0
  %121 = vmatpush1.msra.mxu0 0.0
  %122 = vmatprep.subr.mxu0 0.0
  %123 = vmatpush1.msra.mxu0 0.0
  %124 = vmatprep.subr.mxu0 0.0
  %125 = vmatpush1.msra.mxu0 0.0
  %126 = vmatprep.subr.mxu0 0.0
  %127 = vmatpush1.msra.mxu0 0.0
  %128 = vmatprep.subr.mxu0 0.0
  %129 = vmatpush1.msra.mxu0 0.0
  %130 = vmatprep.subr.mxu0 0.0
  %131 = vmatpush1.msra.mxu0 0.0
  %132 = vmatprep.subr.mxu0 0.0
  %133 = vmatpush1.msra.mxu0 0.0
  %134 = vmatprep.subr.mxu0 0.0
  %135 = vmatpush1.msra.mxu0 0.0
  %136 = vmatprep.subr.mxu0 0.0
  %137 = vmatpush1.msra.mxu0 0.0
  %138 = vmatprep.subr.mxu0 0.0
  %139 = vmatpush1.msra.mxu0 0.0
  %140 = vmatprep.subr.mxu0 0.0
  %141 = vmatpush1.msra.mxu0 0.0
  %142 = vmatprep.mubr.f32.mxu0 0.0
  %143 = vmatmul.mubr.f32.gmra.mrb[0].mxu0 %v60
  %v144 = vpop.f32.mrb[0].mxu0
  %v145 = vadd.f32 %v36, %v144
  %v146 = vpop.f32.mrb[0].mxu0
  %147 = vmatprep.mubr.f32.mxu0 0.0
  %148 = vmatmul.mubr.f32.gmra.mrb[0].mxu0 %v63
  %v149 = vpop.f32.mrb[0].mxu0
  %v150 = vadd.f32 %v41, %v149
  %v151 = vpop.f32.mrb[0].mxu0
  %152 = vmatprep.mubr.f32.mxu0 0.0
  %153 = vmatmul.mubr.f32.gmra.mrb[0].mxu0 %v66
  %v154 = vpop.f32.mrb[0].mxu0
  %v155 = vadd.f32 %v46, %v154
  %v156 = vpop.f32.mrb[0].mxu0
  %157 = vmatprep.mubr.f32.mxu0 0.0
  %158 = vmatmul.mubr.f32.gmra.mrb[0].mxu0 %v69
  %v159 = vpop.f32.mrb[0].mxu0
  %v160 = vadd.f32 %v51, %v159
  %v161 = vpop.f32.mrb[0].mxu0
  %162 = vmatprep.mubr.f32.mxu0 0.0
  %163 = vmatmul.mubr.f32.gmra.mrb[0].mxu0 %v72
  %v164 = vpop.f32.mrb[0].mxu0
  %v165 = vadd.f32 %v56, %v164
  %v166 = vpop.f32.mrb[0].mxu0
  %167 = vdwg.mxu0
  %v168 = vmax.f32 %v145, 0.0
  %v169 = vmax.f32 %v150, 0.0
  %v170 = vmax.f32 %v155, 0.0
  %v171 = vmax.f32 %v160, 0.0
  %v172 = vmax.f32 %v165, 0.0
  %v173 = vld [vmem:[%s3] sm:$0x3]
  %v174 = vld [vmem:[%s4] sm:$0x3]
  %176 = vset.pattern.permute.xlu0 0
  %177 = vperm.xlu0 %176, %v174
  %v178 = vpop.permute.xlu0 %177
  %vm180 = vcmask 326656
  %v182 = vsel %vm180, %v173, 0
  %184 = vmatprep.subr.mxu0 0.0
  %185 = vmatpush1.msra.mxu0 %v168
  %186 = vmatprep.subr.mxu0 0.0
  %187 = vmatpush1.msra.mxu0 %v169
  %188 = vmatprep.subr.mxu0 0.0
  %189 = vmatpush1.msra.mxu0 %v170
  %190 = vmatprep.subr.mxu0 0.0
  %191 = vmatpush1.msra.mxu0 %v171
  %192 = vmatprep.subr.mxu0 0.0
  %193 = vmatpush1.msra.mxu0 %v172
  %194 = vmatprep.subr.mxu0 0.0
  %195 = vmatpush1.msra.mxu0 0.0
  %196 = vmatprep.subr.mxu0 0.0
  %197 = vmatpush1.msra.mxu0 0.0
  %198 = vmatprep.subr.mxu0 0.0
  %199 = vmatpush1.msra.mxu0 0.0
  %200 = vmatprep.subr.mxu0 0.0
  %201 = vmatpush1.msra.mxu0 0.0
  %202 = vmatprep.subr.mxu0 0.0
  %203 = vmatpush1.msra.mxu0 0.0
  %204 = vmatprep.subr.mxu0 0.0
  %205 = vmatpush1.msra.mxu0 0.0
  %206 = vmatprep.subr.mxu0 0.0
  %207 = vmatpush1.msra.mxu0 0.0
  %208 = vmatprep.subr.mxu0 0.0
  %209 = vmatpush1.msra.mxu0 0.0
  %210 = vmatprep.subr.mxu0 0.0
  %211 = vmatpush1.msra.mxu0 0.0
  %212 = vmatprep.subr.mxu0 0.0
  %213 = vmatpush1.msra.mxu0 0.0
  %214 = vmatprep.subr.mxu0 0.0
  %215 = vmatpush1.msra.mxu0 0.0
  %216 = vmatprep.subr.mxu0 0.0
  %217 = vmatpush1.msra.mxu0 0.0
  %218 = vmatprep.subr.mxu0 0.0
  %219 = vmatpush1.msra.mxu0 0.0
  %220 = vmatprep.subr.mxu0 0.0
  %221 = vmatpush1.msra.mxu0 0.0
  %222 = vmatprep.subr.mxu0 0.0
  %223 = vmatpush1.msra.mxu0 0.0
  %224 = vmatprep.subr.mxu0 0.0
  %225 = vmatpush1.msra.mxu0 0.0
  %226 = vmatprep.subr.mxu0 0.0
  %227 = vmatpush1.msra.mxu0 0.0
  %228 = vmatprep.subr.mxu0 0.0
  %229 = vmatpush1.msra.mxu0 0.0
  %230 = vmatprep.subr.mxu0 0.0
  %231 = vmatpush1.msra.mxu0 0.0
  %232 = vmatprep.subr.mxu0 0.0
  %233 = vmatpush1.msra.mxu0 0.0
  %234 = vmatprep.subr.mxu0 0.0
  %235 = vmatpush1.msra.mxu0 0.0
  %236 = vmatprep.subr.mxu0 0.0
  %237 = vmatpush1.msra.mxu0 0.0
  %238 = vmatprep.subr.mxu0 0.0
  %239 = vmatpush1.msra.mxu0 0.0
  %240 = vmatprep.subr.mxu0 0.0
  %241 = vmatpush1.msra.mxu0 0.0
  %242 = vmatprep.subr.mxu0 0.0
  %243 = vmatpush1.msra.mxu0 0.0
  %244 = vmatprep.subr.mxu0 0.0
  %245 = vmatpush1.msra.mxu0 0.0
  %246 = vmatprep.subr.mxu0 0.0
  %247 = vmatpush1.msra.mxu0 0.0
  %248 = vmatprep.mubr.f32.mxu0 0.0
  %249 = vmatmul.mubr.f32.gmra.mrb[0].mxu0 %v182
  %v250 = vpop.f32.mrb[0].mxu0
  %v251 = vadd.f32 %v178, %v250
  %v252 = vpop.f32.mrb[0].mxu0
  %253 = vdwg.mxu0
  %vm254 = vcmask 58368
  %255 = vst.msk [vmem:[%s5] sm:$0x3] %vm254, %v251
  // Predicated region
  $region22: #{fwd_force_pallas.1} parent=0 // pred_check
    _
  $region23: #{fwd_force_pallas.1} parent=0 // pred_check_branch
    %257 = sbr.rel (0) target = $region25
  $region24: #{fwd_force_pallas.1} parent=0 // pred_region
    _
  $region25: #{fwd_force_pallas.1} parent=0 // pred_fallthru
    _
  // Predicated region
  $region26: #{fwd_force_pallas.1} parent=0 // pred_check
    _
  $region27: #{fwd_force_pallas.1} parent=0 // pred_check_branch
    %259 = sbr.rel (0) target = $region29
  $region28: #{fwd_force_pallas.1} parent=0 // pred_region
    _
  $region29: #{fwd_force_pallas.1} parent=0 // pred_fallthru
    _

</llo_original>
